<compile_context>
chip_gen: v7x
topology: tpu7x:2x2x1
jax: 0.10.0
libtpu: 0.0.40
codegen_flags: <defaults>
</compile_context>

<pallas_src>
import jax
import jax.numpy as jnp
from jax.experimental import pallas as pl
from jax.experimental.pallas import tpu as pltpu


def _round_up(x, m):
    return ((x + m - 1) // m) * m


def _make_gather_kernel(maxlen, n_tables):
    """Kernel: refs = (idx_ref, table_ref..., out_ref...)."""

    def kernel(*refs):
        idx_ref = refs[0]
        table_refs = refs[1:1 + n_tables]
        out_refs = refs[1 + n_tables:]

        # clamp to [-maxlen, maxlen-1], then shift to [0, 2*maxlen-1]  (VPU).
        idx = jnp.clip(idx_ref[...], -maxlen, maxlen - 1) + maxlen   # (TN, 1)

        tn = idx.shape[0]
        v = table_refs[0].shape[0]

        # One-hot gather matrix (TN, V). Entries are exactly 0/1, so the MXU
        # matmul with f32 accumulation is bit-identical to a row gather.
        iota = jax.lax.broadcasted_iota(jnp.int32, (tn, v), 1)
        onehot = (iota == idx).astype(table_refs[0].dtype)

        for t_ref, o_ref in zip(table_refs, out_refs):
            o_ref[...] = jnp.dot(
                onehot, t_ref[...],
                preferred_element_type=jnp.float32).astype(o_ref.dtype)

    return kernel


def _embedding_lookup_pallas(idx_flat, tables, *, maxlen, tile_n=1024):
    """Gather rows `clip(idx,-maxlen,maxlen-1)+maxlen` from each table.

    idx_flat : int32[N] raw (un-clamped) relative offsets.
    tables   : tuple of float[2*maxlen, d_model] embedding weights (same
               shape/dtype).
    Returns a tuple of float[N, d_model], one per table.
    """
    n = idx_flat.shape[0]
    v, d_model = tables[0].shape
    dtype = tables[0].dtype
    for t in tables:
        assert t.shape == (v, d_model) and t.dtype == dtype
    n_tables = len(tables)

    # Tile choice: one grid step for small inputs, otherwise tile_n rows/step.
    tn = min(_round_up(max(n, 8), 8), tile_n)
    n_pad = _round_up(n, tn)

    idx2d = jnp.zeros((n_pad, 1), jnp.int32)
    idx2d = idx2d.at[:n, 0].set(idx_flat.astype(jnp.int32))

    grid = (n_pad // tn,)

    in_specs = [pl.BlockSpec((tn, 1), lambda i: (i, 0))]
    # Table(s): full-array block, constant index_map -> stays VMEM resident.
    in_specs += [pl.BlockSpec((v, d_model), lambda i: (0, 0))
                 for _ in range(n_tables)]
    out_specs = tuple(pl.BlockSpec((tn, d_model), lambda i: (i, 0))
                      for _ in range(n_tables))
    out_shapes = tuple(jax.ShapeDtypeStruct((n_pad, d_model), dtype)
                       for _ in range(n_tables))

    itemsize = jnp.dtype(dtype).itemsize
    cost = pl.CostEstimate(
        flops=2 * n_pad * v * d_model * n_tables,
        transcendentals=0,
        bytes_accessed=(n_pad * 4
                        + n_tables * v * d_model * itemsize
                        + n_tables * n_pad * d_model * itemsize),
    )

    outs = pl.pallas_call(
        _make_gather_kernel(maxlen, n_tables),
        out_shape=out_shapes,
        grid_spec=pltpu.PrefetchScalarGridSpec(
            num_scalar_prefetch=0,
            grid=grid,
            in_specs=in_specs,
            out_specs=out_specs,
        ),
        compiler_params=pltpu.CompilerParams(
            dimension_semantics=("parallel",)),
        cost_estimate=cost,
    )(idx2d, *tables)

    return tuple(o[:n] for o in outs)


def relative_positional_encoding(pos_seq, pe_k_weight, pe_v_weight=None, *, maxlen):
    """Pallas port of RelativePositionalEncoding.forward.

    pos_seq:      int array of any shape (relative position offsets).
    pe_k_weight:  float[2*maxlen, d_model]
    pe_v_weight:  optional float[2*maxlen, d_model] (embed_v=True path)
    Returns (pe_k(pos_seq), pe_v(pos_seq) or None).
    """
    orig_shape = pos_seq.shape
    d_model = pe_k_weight.shape[1]

    idx_flat = pos_seq.reshape(-1).astype(jnp.int32)

    tables = ((pe_k_weight,) if pe_v_weight is None
              else (pe_k_weight, pe_v_weight))
    outs = _embedding_lookup_pallas(idx_flat, tables, maxlen=maxlen)

    out_k = outs[0].reshape(*orig_shape, d_model)
    out_v = (outs[1].reshape(*orig_shape, d_model)
             if pe_v_weight is not None else None)
    return out_k, out_v


if __name__ == "__main__":
    d_model = 32
    maxlen = 16
    seq = 8

    key = jax.random.PRNGKey(0)
    k_idx, k_wk, k_wv = jax.random.split(key, 3)

    # Deterministic parameter init (nn.Embedding default: N(0, 1)).
    pe_k_weight = jax.random.normal(k_wk, (2 * maxlen, d_model), dtype=jnp.float32)
    pe_v_weight = jax.random.normal(k_wv, (2 * maxlen, d_model), dtype=jnp.float32)

    # Relative-position offsets, intentionally exceeding [-maxlen, maxlen-1]
    # so the in-kernel clamp path is exercised.
    pos_seq = jax.random.randint(k_idx, (seq, seq), -24, 24, dtype=jnp.int32)

    # Plain-JAX reference.
    ref_idx = jnp.clip(pos_seq, -maxlen, maxlen - 1) + maxlen
    ref_k = jnp.take(pe_k_weight, ref_idx, axis=0)
    ref_v = jnp.take(pe_v_weight, ref_idx, axis=0)

    # embed_v=False (module default).
    out_k, out_v = relative_positional_encoding(
        pos_seq, pe_k_weight, None, maxlen=maxlen)
    out_k = jax.block_until_ready(out_k)
    assert out_k.shape == (seq, seq, d_model)
    assert out_k.dtype == pe_k_weight.dtype
    assert jnp.allclose(out_k, ref_k)
    assert out_v is None

    # embed_v=True (fused k/v lookup in a single pallas_call).
    out_k2, out_v2 = relative_positional_encoding(
        pos_seq, pe_k_weight, pe_v_weight, maxlen=maxlen)
    out_k2 = jax.block_until_ready(out_k2)
    out_v2 = jax.block_until_ready(out_v2)
    assert jnp.allclose(out_k2, ref_k)
    assert jnp.allclose(out_v2, ref_v)

    print("KERNEL_OK")
</pallas_src>

<mosaic_0001>
module attributes {stable_mosaic.version = 11 : i64} {
  func.func @kernel(%arg0: i32, %arg1: memref<64x1xi32, #tpu.memory_space<vmem>>, %arg2: memref<32x32xf32, #tpu.memory_space<vmem>>, %arg3: memref<64x32xf32, #tpu.memory_space<vmem>>) attributes {dimension_semantics = [#tpu.dimension_semantics<parallel>], iteration_bounds = array<i64: 1>, scalar_prefetch = 0 : i64, scratch_operands = 0 : i64, tpu.core_type = #tpu.core_type<tc>, window_params = [{transform_indices = @transform_0, window_bounds = array<i64: 64, 1>}, {pipeline_mode = #tpu.pipeline_mode<synchronous>, transform_indices = @transform_1, window_bounds = array<i64: 32, 32>}, {transform_indices = @transform_2, window_bounds = array<i64: 64, 32>}]} {
    %c0 = arith.constant 0 : index
    %c0_0 = arith.constant 0 : index
    %0 = vector.load %arg1[%c0, %c0_0] : memref<64x1xi32, #tpu.memory_space<vmem>>, vector<64x1xi32>
    %c-16_i32 = arith.constant -16 : i32
    %c15_i32 = arith.constant 15 : i32
    %1 = vector.broadcast %c-16_i32 : i32 to vector<64x1xi32>
    %2 = arith.maxsi %1, %0 : vector<64x1xi32>
    %3 = vector.broadcast %c15_i32 : i32 to vector<64x1xi32>
    %4 = arith.minsi %3, %2 : vector<64x1xi32>
    %c16_i32 = arith.constant 16 : i32
    %5 = vector.broadcast %c16_i32 : i32 to vector<64x1xi32>
    %6 = arith.addi %4, %5 : vector<64x1xi32>
    %7 = tpu.iota {dimensions = array<i32: 1>} : vector<64x32xi32>
    %8 = vector.broadcast %6 : vector<64x1xi32> to vector<64x32xi32>
    %9 = arith.cmpi eq, %7, %8 : vector<64x32xi32>
    %10 = arith.extui %9 : vector<64x32xi1> to vector<64x32xi32>
    %11 = arith.sitofp %10 : vector<64x32xi32> to vector<64x32xf32>
    %c0_1 = arith.constant 0 : index
    %c0_2 = arith.constant 0 : index
    %12 = vector.load %arg2[%c0_1, %c0_2] : memref<32x32xf32, #tpu.memory_space<vmem>>, vector<32x32xf32>
    %cst = arith.constant dense<0.000000e+00> : vector<64x32xf32>
    %13 = tpu.matmul %11, %12, %cst {dimension_numbers = #tpu.dot_dimension_numbers<[1], [0], [0], [1], [0, 0, 1, 1], [], []>} : vector<64x32xf32>, vector<32x32xf32>, vector<64x32xf32> -> vector<64x32xf32>
    %c0_3 = arith.constant 0 : index
    %c0_4 = arith.constant 0 : index
    %14 = vector.load %arg3[%c0_3, %c0_4] : memref<64x32xf32, #tpu.memory_space<vmem>>, vector<64x32xf32>
    tpu.vector_store %arg3[%c0_3, %c0_4], %13 {strides = array<i32>} : memref<64x32xf32, #tpu.memory_space<vmem>>, vector<64x32xf32>,
    return
  }
  func.func @transform_0(%arg0: i32) -> (i32, i32) {
    %c0_i32 = arith.constant 0 : i32
    %c0_i32_0 = arith.constant 0 : i32
    return %arg0, %c0_i32 : i32, i32
  }
  func.func @transform_1(%arg0: i32) -> (i32, i32) {
    %c0_i32 = arith.constant 0 : i32
    %c0_i32_0 = arith.constant 0 : i32
    %c0_i32_1 = arith.constant 0 : i32
    return %c0_i32, %c0_i32_0 : i32, i32
  }
  func.func @transform_2(%arg0: i32) -> (i32, i32) {
    %c0_i32 = arith.constant 0 : i32
    %c0_i32_0 = arith.constant 0 : i32
    return %arg0, %c0_i32 : i32, i32
  }
}

</mosaic_0001>

<llo_original>
// kernel: tpu_custom_call.1
$region0: #{tpu_custom_call.1}
  #allocation0 [shape = 'u32[]', space=smem, size = 0x4, offset = 0x4, fixed_abs, tag = 'smem constant byte address 0x4 - core index']
  #allocation1 [shape = 'u32[144,128]{1,0:T(1,128)}', space=vmem, size = 0x12000, scoped, tag = 'internal scratch']
  %s0 = inlined_call_operand.vmem [shape: s32[64,1], index: 0, kind: input, shape index: {}]
  %s1 = inlined_call_operand.vmem [shape: f32[32,32], index: 1, kind: input, shape index: {}]
  %s2 = inlined_call_operand.vmem [shape: f32[64,32], index: 2, kind: output, shape index: {}]
  %s3 = sld [smem:[#allocation0]]
  $region18: #{tpu_custom_call.1} parent=0
    _
  %s5 = ssub.s32 1, %s3
  %s6 = scalar_select 0, %s5, %s3
  // Predicated region
  $region2: #{tpu_custom_call.1} parent=0 // pred_check
    _
  $region3: #{tpu_custom_call.1} parent=0 // pred_check_branch
    %8 = sbr.rel (0) target = $region5
  $region4: #{tpu_custom_call.1} parent=0 // pred_region
    _
  $region5: #{tpu_custom_call.1} parent=0 // pred_fallthru
    _
  // Predicated region
  $region6: #{tpu_custom_call.1} parent=0 // pred_check
    _
  $region7: #{tpu_custom_call.1} parent=0 // pred_check_branch
    %10 = sbr.rel (0) target = $region9
  $region8: #{tpu_custom_call.1} parent=0 // pred_region
    _
  $region9: #{tpu_custom_call.1} parent=0 // pred_fallthru
    _
  %v11 = vld [vmem:[%s0] sm:$0xff]
  %v12 = vld [vmem:[%s0 + $0x8] sm:$0xff]
  %v13 = vld [vmem:[%s0 + $0x10] sm:$0xff]
  %v14 = vld [vmem:[%s0 + $0x18] sm:$0xff]
  %v15 = vld [vmem:[%s0 + $0x20] sm:$0xff]
  %v16 = vld [vmem:[%s0 + $0x28] sm:$0xff]
  %v17 = vld [vmem:[%s0 + $0x30] sm:$0xff]
  %v18 = vld [vmem:[%s0 + $0x38] sm:$0xff]
  %vm19 = vcmp.gt.s32.totalorder %v11, 4294967280
  %v20 = vsel %vm19, %v11, 4294967280
  %vm21 = vcmp.gt.s32.totalorder %v12, 4294967280
  %v22 = vsel %vm21, %v12, 4294967280
  %vm23 = vcmp.gt.s32.totalorder %v13, 4294967280
  %v24 = vsel %vm23, %v13, 4294967280
  %vm25 = vcmp.gt.s32.totalorder %v14, 4294967280
  %v26 = vsel %vm25, %v14, 4294967280
  %vm27 = vcmp.gt.s32.totalorder %v15, 4294967280
  %v28 = vsel %vm27, %v15, 4294967280
  %vm29 = vcmp.gt.s32.totalorder %v16, 4294967280
  %v30 = vsel %vm29, %v16, 4294967280
  %vm31 = vcmp.gt.s32.totalorder %v17, 4294967280
  %v32 = vsel %vm31, %v17, 4294967280
  %vm33 = vcmp.gt.s32.totalorder %v18, 4294967280
  %v34 = vsel %vm33, %v18, 4294967280
  %vm35 = vcmp.lt.s32.totalorder %v20, 15
  %v36 = vsel %vm35, %v20, 15
  %vm37 = vcmp.lt.s32.totalorder %v22, 15
  %v38 = vsel %vm37, %v22, 15
  %vm39 = vcmp.lt.s32.totalorder %v24, 15
  %v40 = vsel %vm39, %v24, 15
  %vm41 = vcmp.lt.s32.totalorder %v26, 15
  %v42 = vsel %vm41, %v26, 15
  %vm43 = vcmp.lt.s32.totalorder %v28, 15
  %v44 = vsel %vm43, %v28, 15
  %vm45 = vcmp.lt.s32.totalorder %v30, 15
  %v46 = vsel %vm45, %v30, 15
  %vm47 = vcmp.lt.s32.totalorder %v32, 15
  %v48 = vsel %vm47, %v32, 15
  %vm49 = vcmp.lt.s32.totalorder %v34, 15
  %v50 = vsel %vm49, %v34, 15
  %v51 = vadd.s32 %v36, 16
  %v52 = vadd.s32 %v38, 16
  %v53 = vadd.s32 %v40, 16
  %v54 = vadd.s32 %v42, 16
  %v55 = vadd.s32 %v44, 16
  %v56 = vadd.s32 %v46, 16
  %v57 = vadd.s32 %v48, 16
  %v58 = vadd.s32 %v50, 16
  %v59 = vlaneseq
  %v60 = vand.u32 %v59, 127
  %61 = vset.pattern.permute.xlu0 0
  %62 = vperm.xlu0 %61, %v51
  %v63 = vpop.permute.xlu0 %62
  %64 = vset.pattern.permute.xlu0 0
  %65 = vperm.xlu0 %64, %v52
  %v66 = vpop.permute.xlu0 %65
  %67 = vset.pattern.permute.xlu0 0
  %68 = vperm.xlu0 %67, %v53
  %v69 = vpop.permute.xlu0 %68
  %70 = vset.pattern.permute.xlu0 0
  %71 = vperm.xlu0 %70, %v54
  %v72 = vpop.permute.xlu0 %71
  %73 = vset.pattern.permute.xlu0 0
  %74 = vperm.xlu0 %73, %v55
  %v75 = vpop.permute.xlu0 %74
  %76 = vset.pattern.permute.xlu0 0
  %77 = vperm.xlu0 %76, %v56
  %v78 = vpop.permute.xlu0 %77
  %79 = vset.pattern.permute.xlu0 0
  %80 = vperm.xlu0 %79, %v57
  %v81 = vpop.permute.xlu0 %80
  %82 = vset.pattern.permute.xlu0 0
  %83 = vperm.xlu0 %82, %v58
  %v84 = vpop.permute.xlu0 %83
  %vm85 = vcmp.eq.s32.totalorder %v60, %v63
  %vm86 = vcmp.eq.s32.totalorder %v60, %v66
  %vm87 = vcmp.eq.s32.totalorder %v60, %v69
  %vm88 = vcmp.eq.s32.totalorder %v60, %v72
  %vm89 = vcmp.eq.s32.totalorder %v60, %v75
  %vm90 = vcmp.eq.s32.totalorder %v60, %v78
  %vm91 = vcmp.eq.s32.totalorder %v60, %v81
  %vm92 = vcmp.eq.s32.totalorder %v60, %v84
  %v93 = vsel %vm85, 1, 0
  %v94 = vsel %vm86, 1, 0
  %v95 = vsel %vm87, 1, 0
  %v96 = vsel %vm88, 1, 0
  %v97 = vsel %vm89, 1, 0
  %v98 = vsel %vm90, 1, 0
  %v99 = vsel %vm91, 1, 0
  %v100 = vsel %vm92, 1, 0
  %v101 = vcvt.s32.f32 %v93
  %v102 = vcvt.s32.f32 %v94
  %v103 = vcvt.s32.f32 %v95
  %v104 = vcvt.s32.f32 %v96
  %v105 = vcvt.s32.f32 %v97
  %v106 = vcvt.s32.f32 %v98
  %v107 = vcvt.s32.f32 %v99
  %v108 = vcvt.s32.f32 %v100
  %v109 = vld [vmem:[%s1] sm:$0xff]
  %v110 = vld [vmem:[%s1 + $0x8] sm:$0xff]
  %v111 = vld [vmem:[%s1 + $0x10] sm:$0xff]
  %v112 = vld [vmem:[%s1 + $0x18] sm:$0xff]
  %vm113 = vcmask 261120
  %v115 = vsel %vm113, %v101, 0
  %v118 = vsel %vm113, %v102, 0
  %v121 = vsel %vm113, %v103, 0
  %v124 = vsel %vm113, %v104, 0
  %v127 = vsel %vm113, %v105, 0
  %v130 = vsel %vm113, %v106, 0
  %v133 = vsel %vm113, %v107, 0
  %v136 = vsel %vm113, %v108, 0
  %138 = vmatprep.subr.mxu0 0.0
  %139 = vmatpush1.msra.mxu0 %v109
  %140 = vmatprep.subr.mxu0 0.0
  %141 = vmatpush1.msra.mxu0 %v110
  %142 = vmatprep.subr.mxu0 0.0
  %143 = vmatpush1.msra.mxu0 %v111
  %144 = vmatprep.subr.mxu0 0.0
  %145 = vmatpush1.msra.mxu0 %v112
  %146 = vmatprep.subr.mxu0 0.0
  %147 = vmatpush1.msra.mxu0 0.0
  %148 = vmatprep.subr.mxu0 0.0
  %149 = vmatpush1.msra.mxu0 0.0
  %150 = vmatprep.subr.mxu0 0.0
  %151 = vmatpush1.msra.mxu0 0.0
  %152 = vmatprep.subr.mxu0 0.0
  %153 = vmatpush1.msra.mxu0 0.0
  %154 = vmatprep.subr.mxu0 0.0
  %155 = vmatpush1.msra.mxu0 0.0
  %156 = vmatprep.subr.mxu0 0.0
  %157 = vmatpush1.msra.mxu0 0.0
  %158 = vmatprep.subr.mxu0 0.0
  %159 = vmatpush1.msra.mxu0 0.0
  %160 = vmatprep.subr.mxu0 0.0
  %161 = vmatpush1.msra.mxu0 0.0
  %162 = vmatprep.subr.mxu0 0.0
  %163 = vmatpush1.msra.mxu0 0.0
  %164 = vmatprep.subr.mxu0 0.0
  %165 = vmatpush1.msra.mxu0 0.0
  %166 = vmatprep.subr.mxu0 0.0
  %167 = vmatpush1.msra.mxu0 0.0
  %168 = vmatprep.subr.mxu0 0.0
  %169 = vmatpush1.msra.mxu0 0.0
  %170 = vmatprep.subr.mxu0 0.0
  %171 = vmatpush1.msra.mxu0 0.0
  %172 = vmatprep.subr.mxu0 0.0
  %173 = vmatpush1.msra.mxu0 0.0
  %174 = vmatprep.subr.mxu0 0.0
  %175 = vmatpush1.msra.mxu0 0.0
  %176 = vmatprep.subr.mxu0 0.0
  %177 = vmatpush1.msra.mxu0 0.0
  %178 = vmatprep.subr.mxu0 0.0
  %179 = vmatpush1.msra.mxu0 0.0
  %180 = vmatprep.subr.mxu0 0.0
  %181 = vmatpush1.msra.mxu0 0.0
  %182 = vmatprep.subr.mxu0 0.0
  %183 = vmatpush1.msra.mxu0 0.0
  %184 = vmatprep.subr.mxu0 0.0
  %185 = vmatpush1.msra.mxu0 0.0
  %186 = vmatprep.subr.mxu0 0.0
  %187 = vmatpush1.msra.mxu0 0.0
  %188 = vmatprep.subr.mxu0 0.0
  %189 = vmatpush1.msra.mxu0 0.0
  %190 = vmatprep.subr.mxu0 0.0
  %191 = vmatpush1.msra.mxu0 0.0
  %192 = vmatprep.subr.mxu0 0.0
  %193 = vmatpush1.msra.mxu0 0.0
  %194 = vmatprep.subr.mxu0 0.0
  %195 = vmatpush1.msra.mxu0 0.0
  %196 = vmatprep.subr.mxu0 0.0
  %197 = vmatpush1.msra.mxu0 0.0
  %198 = vmatprep.subr.mxu0 0.0
  %199 = vmatpush1.msra.mxu0 0.0
  %200 = vmatprep.subr.mxu0 0.0
  %201 = vmatpush1.msra.mxu0 0.0
  %202 = vmatprep.mubr.f32.mxu0 0.0
  %203 = vmatmul.mubr.f32.gmra.mrb[0].mxu0 %v115
  %v204 = vpop.f32.mrb[0].mxu0
  %v205 = vadd.f32 0.0, %v204
  %v206 = vpop.f32.mrb[0].mxu0
  %207 = vmatprep.mubr.f32.mxu0 0.0
  %208 = vmatmul.mubr.f32.gmra.mrb[0].mxu0 %v118
  %v209 = vpop.f32.mrb[0].mxu0
  %v210 = vadd.f32 0.0, %v209
  %v211 = vpop.f32.mrb[0].mxu0
  %212 = vmatprep.mubr.f32.mxu0 0.0
  %213 = vmatmul.mubr.f32.gmra.mrb[0].mxu0 %v121
  %v214 = vpop.f32.mrb[0].mxu0
  %v215 = vadd.f32 0.0, %v214
  %v216 = vpop.f32.mrb[0].mxu0
  %217 = vmatprep.mubr.f32.mxu0 0.0
  %218 = vmatmul.mubr.f32.gmra.mrb[0].mxu0 %v124
  %v219 = vpop.f32.mrb[0].mxu0
  %v220 = vadd.f32 0.0, %v219
  %v221 = vpop.f32.mrb[0].mxu0
  %222 = vmatprep.mubr.f32.mxu0 0.0
  %223 = vmatmul.mubr.f32.gmra.mrb[0].mxu0 %v127
  %v224 = vpop.f32.mrb[0].mxu0
  %v225 = vadd.f32 0.0, %v224
  %v226 = vpop.f32.mrb[0].mxu0
  %227 = vmatprep.mubr.f32.mxu0 0.0
  %228 = vmatmul.mubr.f32.gmra.mrb[0].mxu0 %v130
  %v229 = vpop.f32.mrb[0].mxu0
  %v230 = vadd.f32 0.0, %v229
  %v231 = vpop.f32.mrb[0].mxu0
  %232 = vmatprep.mubr.f32.mxu0 0.0
  %233 = vmatmul.mubr.f32.gmra.mrb[0].mxu0 %v133
  %v234 = vpop.f32.mrb[0].mxu0
  %v235 = vadd.f32 0.0, %v234
  %v236 = vpop.f32.mrb[0].mxu0
  %237 = vmatprep.mubr.f32.mxu0 0.0
  %238 = vmatmul.mubr.f32.gmra.mrb[0].mxu0 %v136
  %v239 = vpop.f32.mrb[0].mxu0
  %v240 = vadd.f32 0.0, %v239
  %v241 = vpop.f32.mrb[0].mxu0
  %242 = vdwg.mxu0
  %243 = vst.msk [vmem:[%s2] sm:$0xff] %vm113, %v205
  %244 = vst.msk [vmem:[%s2 + $0x8] sm:$0xff] %vm113, %v210
  %245 = vst.msk [vmem:[%s2 + $0x10] sm:$0xff] %vm113, %v215
  %246 = vst.msk [vmem:[%s2 + $0x18] sm:$0xff] %vm113, %v220
  %247 = vst.msk [vmem:[%s2 + $0x20] sm:$0xff] %vm113, %v225
  %248 = vst.msk [vmem:[%s2 + $0x28] sm:$0xff] %vm113, %v230
  %249 = vst.msk [vmem:[%s2 + $0x30] sm:$0xff] %vm113, %v235
  %250 = vst.msk [vmem:[%s2 + $0x38] sm:$0xff] %vm113, %v240
  // Predicated region
  $region10: #{tpu_custom_call.1} parent=0 // pred_check
    _
  $region11: #{tpu_custom_call.1} parent=0 // pred_check_branch
    %252 = sbr.rel (0) target = $region13
  $region12: #{tpu_custom_call.1} parent=0 // pred_region
    _
  $region13: #{tpu_custom_call.1} parent=0 // pred_fallthru
    _
  // Predicated region
  $region14: #{tpu_custom_call.1} parent=0 // pred_check
    _
  $region15: #{tpu_custom_call.1} parent=0 // pred_check_branch
    %254 = sbr.rel (0) target = $region17
  $region16: #{tpu_custom_call.1} parent=0 // pred_region
    _
  $region17: #{tpu_custom_call.1} parent=0 // pred_fallthru
    _

</llo_original>
